<compile_context>
chip_gen: v7x
topology: tpu7x:2x2x1
jax: 0.10.0
libtpu: 0.0.40
codegen_flags: <defaults>
</compile_context>

<pallas_src>
import jax
import jax.numpy as jnp
from jax.experimental import pallas as pl
from jax.experimental.pallas import tpu as pltpu


def _fused_head_kernel(ids_ref, mask_ref, embed_ref, w1_ref, b1_ref,
                       w2_ref, b2_ref, o_ref):
    """Fused [CLS]-gather + mask + Linear->ReLU->Linear, fp32 MXU accumulation."""
    tb = ids_ref.shape[0]
    vocab = embed_ref.shape[0]

    # [CLS] embedding gather on the MXU: one_hot(ids) @ embed  (exact — one-hot).
    ids = ids_ref[...]                                                  # (TB, 1) int32
    lanes = jax.lax.broadcasted_iota(jnp.int32, (tb, vocab), 1)         # (TB, V)
    one_hot = (lanes == ids).astype(jnp.bfloat16)                       # (TB, V) bf16
    x = jnp.dot(one_hot, embed_ref[...],
                preferred_element_type=jnp.float32)                     # (TB, D_in) f32
    # TODO(synk): masking the [CLS] hidden state by attention_masks[:, 0] is not
    # the true ELECTRA semantics (the mask gates attention inside the encoder);
    # kept only because the encoder here is synthetic.
    x = (x * mask_ref[...]).astype(jnp.bfloat16)                        # mask + bf16 cast

    # classifier head
    h = jnp.dot(x, w1_ref[...], preferred_element_type=jnp.float32)     # (TB, H) f32 acc
    h = jnp.maximum(h + b1_ref[...], 0.0).astype(jnp.bfloat16)          # bias + ReLU
    o = jnp.dot(h, w2_ref[...], preferred_element_type=jnp.float32)     # (TB, Dp) f32 acc
    o_ref[...] = (o + b2_ref[...]).astype(o_ref.dtype)                  # lane-dense store


def _pick_batch_tile(batch, tb_max=1024):
    """Batch tile: full-array block for tiny B; >=2 tiles for medium B so both
    v7x TensorCores get work; capped at 1024 rows for very large B."""
    if batch <= 16:
        return batch                       # block_shape == array shape: always legal
    half = -(-batch // 2)                  # ceil(B / 2)
    half = ((half + 7) // 8) * 8           # sublane-aligned
    return min(tb_max, half)


def classifier_head_fused(cls_ids, cls_mask, embed, w1, b1_2d, w2_p, b2_p, d_out):
    """Pallas wrapper for the fused [CLS]-gather + Linear->ReLU->Linear head.

    cls_ids  : (B, 1)     int32   [CLS] token ids
    cls_mask : (B, 1)     f32     [CLS] attention mask
    embed    : (V, D_in)  bf16    synthetic token-embedding table (V = 128)
    w1       : (D_in, H)  bf16
    b1_2d    : (1, H)     f32
    w2_p     : (H, Dp)    bf16, lane-padded to a multiple of 128
    b2_p     : (1, Dp)    f32,  lane-padded
    Returns (B, d_out) float32 logits.
    """
    B = cls_ids.shape[0]
    vocab, d_in = embed.shape
    H = w1.shape[1]
    Dp = w2_p.shape[1]

    tb = _pick_batch_tile(B)
    grid = (pl.cdiv(B, tb),)

    bytes_accessed = (
        B * (cls_ids.dtype.itemsize + cls_mask.dtype.itemsize)
        + embed.size * embed.dtype.itemsize
        + w1.size * w1.dtype.itemsize + b1_2d.size * 4
        + w2_p.size * w2_p.dtype.itemsize + b2_p.size * 4
        + B * Dp * 4
    )
    cost = pl.CostEstimate(
        flops=2 * B * (vocab * d_in + d_in * H + H * Dp),
        transcendentals=0,
        bytes_accessed=bytes_accessed,
    )

    out_p = pl.pallas_call(
        _fused_head_kernel,
        out_shape=jax.ShapeDtypeStruct((B, Dp), jnp.float32),
        grid=grid,
        in_specs=[
            pl.BlockSpec((tb, 1), lambda i: (i, 0)),        # cls ids, tiled over batch
            pl.BlockSpec((tb, 1), lambda i: (i, 0)),        # cls mask, tiled over batch
            pl.BlockSpec((vocab, d_in), lambda i: (0, 0)),  # embed table (bf16), grid-invariant
            pl.BlockSpec((d_in, H), lambda i: (0, 0)),      # W1 (bf16), grid-invariant
            pl.BlockSpec((1, H), lambda i: (0, 0)),         # b1 (f32)
            pl.BlockSpec((H, Dp), lambda i: (0, 0)),        # W2 (bf16, lane-padded)
            pl.BlockSpec((1, Dp), lambda i: (0, 0)),        # b2 (f32, lane-padded)
        ],
        out_specs=pl.BlockSpec((tb, Dp), lambda i: (i, 0)), # lane-dense 128-wide stores
        compiler_params=pltpu.CompilerParams(
            dimension_semantics=("parallel",),
        ),
        cost_estimate=cost,
    )(cls_ids, cls_mask, embed, w1, b1_2d, w2_p, b2_p)

    return out_p[:, :d_out]


class ElectraClassifierPallas:
    """JAX/Pallas re-implementation of ElectraClassifier.forward."""

    def __init__(self, key, hidden_dim=128, d_in=768, d_out=5, vocab_size=128):
        k1, k2, k3, k4, k5 = jax.random.split(key, 5)
        # TODO(synk): the pretrained 'google/electra-base-discriminator' encoder
        # has no clean Pallas equivalent without its checkpoint; replaced by a
        # deterministic synthetic token-embedding table so the [CLS] hidden
        # state has the correct (B, 768) shape.
        self.embed = 0.02 * jax.random.normal(k1, (vocab_size, d_in), jnp.float32)

        # classifier = nn.Sequential(Linear(D_in, H), ReLU(), Linear(H, 5))
        self.w1 = jax.random.normal(k2, (d_in, hidden_dim), jnp.float32) / jnp.sqrt(d_in)
        self.b1 = 0.01 * jax.random.normal(k3, (hidden_dim,), jnp.float32)
        self.w2 = jax.random.normal(k4, (hidden_dim, d_out), jnp.float32) / jnp.sqrt(hidden_dim)
        self.b2 = 0.01 * jax.random.normal(k5, (d_out,), jnp.float32)
        self.d_out = d_out

        # Kernel-ready parameters prepared ONCE (hoisted out of forward):
        #  * embed + W1 + W2 in bf16 (fp32 MXU accumulation in-kernel)
        #  * b1 as (1, H) for in-kernel broadcast
        #  * W2 / b2 lane-padded to 128 so output stores are unmasked `vst`s
        d_pad = ((d_out + 127) // 128) * 128
        self.embed_k = self.embed.astype(jnp.bfloat16)
        self.w1_k = self.w1.astype(jnp.bfloat16)
        self.b1_k = self.b1.reshape(1, hidden_dim)
        self.w2_k = (jnp.zeros((hidden_dim, d_pad), jnp.bfloat16)
                     .at[:, :d_out].set(self.w2.astype(jnp.bfloat16)))
        self.b2_k = jnp.zeros((1, d_pad), jnp.float32).at[:, :d_out].set(self.b2)

    def __call__(self, input_ids, attention_masks):
        # Only the [CLS] (position 0) hidden state is consumed downstream; the
        # gather itself happens inside the Pallas kernel (one_hot @ embed on
        # the MXU), so only the ids / mask scalars travel through HBM.
        cls_ids = input_ids[:, 0:1].astype(jnp.int32)            # (B, 1)
        cls_mask = attention_masks[:, 0:1].astype(jnp.float32)   # (B, 1)
        return classifier_head_fused(
            cls_ids, cls_mask, self.embed_k, self.w1_k, self.b1_k,
            self.w2_k, self.b2_k, self.d_out,
        )


if __name__ == "__main__":
    key = jax.random.PRNGKey(0)
    model_key, data_key = jax.random.split(key)

    model = ElectraClassifierPallas(model_key, hidden_dim=128, d_in=768, d_out=5)

    batch, seq = 2, 8
    input_ids = jax.random.randint(data_key, (batch, seq), 0, 128, dtype=jnp.int32)
    attention_masks = jnp.ones((batch, seq), dtype=jnp.int32)

    forward = jax.jit(model.__call__)
    logits = jax.block_until_ready(forward(input_ids, attention_masks))

    assert logits.shape == (batch, 5), logits.shape

    # pure-JAX reference matching the kernel's bf16-weight / fp32-acc recipe
    ids = input_ids[:, 0]
    mask = attention_masks[:, 0:1].astype(jnp.float32)
    sent = (model.embed_k[ids].astype(jnp.float32) * mask).astype(jnp.bfloat16)
    h_ref = jnp.maximum(
        jnp.dot(sent, model.w1_k, preferred_element_type=jnp.float32) + model.b1, 0.0)
    ref = (jnp.dot(h_ref.astype(jnp.bfloat16), model.w2_k[:, :5],
                   preferred_element_type=jnp.float32) + model.b2)
    assert jnp.allclose(logits, ref, atol=1e-3, rtol=1e-3), (
        float(jnp.max(jnp.abs(logits - ref))))

    # full-fp32 reference of the true head (looser tolerance for bf16 weights)
    sent32 = model.embed[ids] * mask
    ref32 = jnp.maximum(sent32 @ model.w1 + model.b1, 0.0) @ model.w2 + model.b2
    assert jnp.allclose(logits, ref32, atol=1e-2, rtol=1e-2), (
        float(jnp.max(jnp.abs(logits - ref32))))

    print("KERNEL_OK")
</pallas_src>

<mosaic_0001>
module attributes {stable_mosaic.version = 11 : i64} {
  func.func @_fused_head_kernel(%arg0: i32, %arg1: memref<2x1xi32, #tpu.memory_space<vmem>>, %arg2: memref<2x1xf32, #tpu.memory_space<vmem>>, %arg3: memref<128x768xbf16, #tpu.memory_space<vmem>>, %arg4: memref<768x128xbf16, #tpu.memory_space<vmem>>, %arg5: memref<1x128xf32, #tpu.memory_space<vmem>>, %arg6: memref<128x128xbf16, #tpu.memory_space<vmem>>, %arg7: memref<1x128xf32, #tpu.memory_space<vmem>>, %arg8: memref<2x128xf32, #tpu.memory_space<vmem>>) attributes {dimension_semantics = [#tpu.dimension_semantics<parallel>], iteration_bounds = array<i64: 1>, scalar_prefetch = 0 : i64, scratch_operands = 0 : i64, tpu.core_type = #tpu.core_type<tc>, window_params = [{transform_indices = @transform_0, window_bounds = array<i64: 2, 1>}, {transform_indices = @transform_1, window_bounds = array<i64: 2, 1>}, {pipeline_mode = #tpu.pipeline_mode<synchronous>, transform_indices = @transform_2, window_bounds = array<i64: 128, 768>}, {pipeline_mode = #tpu.pipeline_mode<synchronous>, transform_indices = @transform_3, window_bounds = array<i64: 768, 128>}, {pipeline_mode = #tpu.pipeline_mode<synchronous>, transform_indices = @transform_4, window_bounds = array<i64: 1, 128>}, {pipeline_mode = #tpu.pipeline_mode<synchronous>, transform_indices = @transform_5, window_bounds = array<i64: 128, 128>}, {pipeline_mode = #tpu.pipeline_mode<synchronous>, transform_indices = @transform_6, window_bounds = array<i64: 1, 128>}, {transform_indices = @transform_7, window_bounds = array<i64: 2, 128>}]} {
    %c0 = arith.constant 0 : index
    %c0_0 = arith.constant 0 : index
    %0 = vector.load %arg1[%c0, %c0_0] : memref<2x1xi32, #tpu.memory_space<vmem>>, vector<2x1xi32>
    %1 = tpu.iota {dimensions = array<i32: 1>} : vector<2x128xi32>
    %2 = vector.broadcast %0 : vector<2x1xi32> to vector<2x128xi32>
    %3 = arith.cmpi eq, %1, %2 : vector<2x128xi32>
    %4 = arith.extui %3 : vector<2x128xi1> to vector<2x128xi32>
    %5 = arith.sitofp %4 : vector<2x128xi32> to vector<2x128xf32>
    %6 = arith.truncf %5 : vector<2x128xf32> to vector<2x128xbf16>
    %c0_1 = arith.constant 0 : index
    %c0_2 = arith.constant 0 : index
    %7 = vector.load %arg3[%c0_1, %c0_2] : memref<128x768xbf16, #tpu.memory_space<vmem>>, vector<128x768xbf16>
    %cst = arith.constant dense<0.000000e+00> : vector<2x768xf32>
    %8 = tpu.matmul %6, %7, %cst {dimension_numbers = #tpu.dot_dimension_numbers<[1], [0], [0], [1], [0, 0, 1, 1], [], []>} : vector<2x128xbf16>, vector<128x768xbf16>, vector<2x768xf32> -> vector<2x768xf32>
    %c0_3 = arith.constant 0 : index
    %c0_4 = arith.constant 0 : index
    %9 = vector.load %arg2[%c0_3, %c0_4] : memref<2x1xf32, #tpu.memory_space<vmem>>, vector<2x1xf32>
    %10 = vector.broadcast %9 : vector<2x1xf32> to vector<2x768xf32>
    %11 = arith.mulf %8, %10 : vector<2x768xf32>
    %12 = arith.truncf %11 : vector<2x768xf32> to vector<2x768xbf16>
    %c0_5 = arith.constant 0 : index
    %c0_6 = arith.constant 0 : index
    %13 = vector.load %arg4[%c0_5, %c0_6] : memref<768x128xbf16, #tpu.memory_space<vmem>>, vector<768x128xbf16>
    %cst_7 = arith.constant dense<0.000000e+00> : vector<2x128xf32>
    %14 = tpu.matmul %12, %13, %cst_7 {dimension_numbers = #tpu.dot_dimension_numbers<[1], [0], [0], [1], [0, 0, 1, 1], [], []>} : vector<2x768xbf16>, vector<768x128xbf16>, vector<2x128xf32> -> vector<2x128xf32>
    %c0_8 = arith.constant 0 : index
    %c0_9 = arith.constant 0 : index
    %15 = vector.load %arg5[%c0_8, %c0_9] : memref<1x128xf32, #tpu.memory_space<vmem>>, vector<1x128xf32>
    %16 = vector.broadcast %15 : vector<1x128xf32> to vector<2x128xf32>
    %17 = arith.addf %14, %16 : vector<2x128xf32>
    %cst_10 = arith.constant 0.000000e+00 : f32
    %18 = vector.broadcast %cst_10 : f32 to vector<2x128xf32>
    %19 = arith.maximumf %17, %18 : vector<2x128xf32>
    %20 = arith.truncf %19 : vector<2x128xf32> to vector<2x128xbf16>
    %c0_11 = arith.constant 0 : index
    %c0_12 = arith.constant 0 : index
    %21 = vector.load %arg6[%c0_11, %c0_12] : memref<128x128xbf16, #tpu.memory_space<vmem>>, vector<128x128xbf16>
    %cst_13 = arith.constant dense<0.000000e+00> : vector<2x128xf32>
    %22 = tpu.matmul %20, %21, %cst_13 {dimension_numbers = #tpu.dot_dimension_numbers<[1], [0], [0], [1], [0, 0, 1, 1], [], []>} : vector<2x128xbf16>, vector<128x128xbf16>, vector<2x128xf32> -> vector<2x128xf32>
    %c0_14 = arith.constant 0 : index
    %c0_15 = arith.constant 0 : index
    %23 = vector.load %arg7[%c0_14, %c0_15] : memref<1x128xf32, #tpu.memory_space<vmem>>, vector<1x128xf32>
    %24 = vector.broadcast %23 : vector<1x128xf32> to vector<2x128xf32>
    %25 = arith.addf %22, %24 : vector<2x128xf32>
    %c0_16 = arith.constant 0 : index
    %c0_17 = arith.constant 0 : index
    %26 = vector.load %arg8[%c0_16, %c0_17] : memref<2x128xf32, #tpu.memory_space<vmem>>, vector<2x128xf32>
    tpu.vector_store %arg8[%c0_16, %c0_17], %25 {strides = array<i32>} : memref<2x128xf32, #tpu.memory_space<vmem>>, vector<2x128xf32>,
    return
  }
  func.func @transform_0(%arg0: i32) -> (i32, i32) {
    %c0_i32 = arith.constant 0 : i32
    %c0_i32_0 = arith.constant 0 : i32
    return %arg0, %c0_i32 : i32, i32
  }
  func.func @transform_1(%arg0: i32) -> (i32, i32) {
    %c0_i32 = arith.constant 0 : i32
    %c0_i32_0 = arith.constant 0 : i32
    return %arg0, %c0_i32 : i32, i32
  }
  func.func @transform_2(%arg0: i32) -> (i32, i32) {
    %c0_i32 = arith.constant 0 : i32
    %c0_i32_0 = arith.constant 0 : i32
    %c0_i32_1 = arith.constant 0 : i32
    return %c0_i32, %c0_i32_0 : i32, i32
  }
  func.func @transform_3(%arg0: i32) -> (i32, i32) {
    %c0_i32 = arith.constant 0 : i32
    %c0_i32_0 = arith.constant 0 : i32
    %c0_i32_1 = arith.constant 0 : i32
    return %c0_i32, %c0_i32_0 : i32, i32
  }
  func.func @transform_4(%arg0: i32) -> (i32, i32) {
    %c0_i32 = arith.constant 0 : i32
    %c0_i32_0 = arith.constant 0 : i32
    %c0_i32_1 = arith.constant 0 : i32
    return %c0_i32, %c0_i32_0 : i32, i32
  }
  func.func @transform_5(%arg0: i32) -> (i32, i32) {
    %c0_i32 = arith.constant 0 : i32
    %c0_i32_0 = arith.constant 0 : i32
    %c0_i32_1 = arith.constant 0 : i32
    return %c0_i32, %c0_i32_0 : i32, i32
  }
  func.func @transform_6(%arg0: i32) -> (i32, i32) {
    %c0_i32 = arith.constant 0 : i32
    %c0_i32_0 = arith.constant 0 : i32
    %c0_i32_1 = arith.constant 0 : i32
    return %c0_i32, %c0_i32_0 : i32, i32
  }
  func.func @transform_7(%arg0: i32) -> (i32, i32) {
    %c0_i32 = arith.constant 0 : i32
    %c0_i32_0 = arith.constant 0 : i32
    return %arg0, %c0_i32 : i32, i32
  }
}

</mosaic_0001>

<llo_original>
// kernel: a_call__.1
$region0: #{a_call__.1}
  #allocation0 [shape = 'u32[]', space=smem, size = 0x4, offset = 0x4, fixed_abs, tag = 'smem constant byte address 0x4 - core index']
  #allocation1 [shape = 'u32[144,128]{1,0:T(1,128)}', space=vmem, size = 0x12000, scoped, tag = 'internal scratch']
  %s0 = inlined_call_operand.vmem [shape: s32[2,1], index: 0, kind: input, shape index: {}]
  %s1 = inlined_call_operand.vmem [shape: f32[2,1], index: 1, kind: input, shape index: {}]
  %s2 = inlined_call_operand.vmem [shape: bf16[128,768], index: 2, kind: input, shape index: {}]
  %s3 = inlined_call_operand.vmem [shape: bf16[768,128], index: 3, kind: input, shape index: {}]
  %s4 = inlined_call_operand.vmem [shape: f32[1,128], index: 4, kind: input, shape index: {}]
  %s5 = inlined_call_operand.vmem [shape: bf16[128,128], index: 5, kind: input, shape index: {}]
  %s6 = inlined_call_operand.vmem [shape: f32[1,128], index: 6, kind: input, shape index: {}]
  %s7 = inlined_call_operand.hbm [shape: f32[2,128], index: 7, kind: output, shape index: {}]
  %s8 = sld [smem:[#allocation0]]
  $region38: #{a_call__.1} parent=0
    _
  %s10 = ssub.s32 1, %s8
  %s11 = scalar_select 0, %s10, %s8
  $region1: #{a_call__.1} parent=0
    #allocation2 [shape = 'u8[1024]{0}', space=vmem, size = 0x400, scoped, tag = 'output window, operand 0, single buffered']
    #allocation3 [shape = 's32[1]{0}', space=sflag, size = 0x4, scoped, tag = 'scoped memory for a_call__.1']
    %12 = vsyncpa [#allocation3], 0
    // Predicated region
    $region2: #{a_call__.1} parent=1 // pred_check
      _
    $region3: #{a_call__.1} parent=1 // pred_check_branch
      %14 = sbr.rel (0) target = $region5
    $region4: #{a_call__.1} parent=1 // pred_region
      _
    $region5: #{a_call__.1} parent=1 // pred_fallthru
      _
    // Predicated region
    $region6: #{a_call__.1} parent=1 // pred_check
      _
    $region7: #{a_call__.1} parent=1 // pred_check_branch
      %16 = sbr.rel (0) target = $region9
    $region8: #{a_call__.1} parent=1 // pred_region
      _
    $region9: #{a_call__.1} parent=1 // pred_fallthru
      _
    // Predicated region
    $region10: #{a_call__.1} parent=1 // pred_check
      _
    $region11: #{a_call__.1} parent=1 // pred_check_branch
      %18 = sbr.rel (0) target = $region13
    $region12: #{a_call__.1} parent=1 // pred_region
      _
    $region13: #{a_call__.1} parent=1 // pred_fallthru
      _
    // Predicated region
    $region14: #{a_call__.1} parent=1 // pred_check
      _
    $region15: #{a_call__.1} parent=1 // pred_check_branch
      %20 = sbr.rel (0) target = $region17
    $region16: #{a_call__.1} parent=1 // pred_region
      _
    $region17: #{a_call__.1} parent=1 // pred_fallthru
      _
    // Predicated region
    $region18: #{a_call__.1} parent=1 // pred_check
      _
    $region19: #{a_call__.1} parent=1 // pred_check_branch
      %22 = sbr.rel (0) target = $region21
    $region20: #{a_call__.1} parent=1 // pred_region
      _
    $region21: #{a_call__.1} parent=1 // pred_fallthru
      _
    // Predicated region
    $region22: #{a_call__.1} parent=1 // pred_check
      _
    $region23: #{a_call__.1} parent=1 // pred_check_branch
      %24 = sbr.rel (0) target = $region25
    $region24: #{a_call__.1} parent=1 // pred_region
      _
    $region25: #{a_call__.1} parent=1 // pred_fallthru
      _
    // Predicated region
    $region26: #{a_call__.1} parent=1 // pred_check
      _
    $region27: #{a_call__.1} parent=1 // pred_check_branch
      %26 = sbr.rel (0) target = $region29
    $region28: #{a_call__.1} parent=1 // pred_region
      _
    $region29: #{a_call__.1} parent=1 // pred_fallthru
      _
    %v28 = vld [vmem:[%s0] sm:$0x3]
    %v29 = vlaneseq
    %v30 = vand.u32 %v29, 127
    %31 = vset.pattern.permute.xlu0 0
    %32 = vperm.xlu0 %31, %v28
    %v33 = vpop.permute.xlu0 %32
    %vm34 = vcmp.eq.s32.totalorder %v30, %v33
    %v35 = vsel %vm34, 1, 0
    %v36 = vcvt.s32.f32 %v35
    %v37 = vpack.c.bf16 %v36, %v36
    %v38 = vld [vmem:[%s2] sm:$0xff]
    %v39 = vld [vmem:[%s2 + $0x8] sm:$0xff]
    %v40 = vld [vmem:[%s2 + $0x10] sm:$0xff]
    %v41 = vld [vmem:[%s2 + $0x18] sm:$0xff]
    %v42 = vld [vmem:[%s2 + $0x20] sm:$0xff]
    %v43 = vld [vmem:[%s2 + $0x28] sm:$0xff]
    %v44 = vld [vmem:[%s2 + $0x30] sm:$0xff]
    %v45 = vld [vmem:[%s2 + $0x38] sm:$0xff]
    %v46 = vld [vmem:[%s2 + $0x40] sm:$0xff]
    %v47 = vld [vmem:[%s2 + $0x48] sm:$0xff]
    %v48 = vld [vmem:[%s2 + $0x50] sm:$0xff]
    %v49 = vld [vmem:[%s2 + $0x58] sm:$0xff]
    %v50 = vld [vmem:[%s2 + $0x60] sm:$0xff]
    %v51 = vld [vmem:[%s2 + $0x68] sm:$0xff]
    %v52 = vld [vmem:[%s2 + $0x70] sm:$0xff]
    %v53 = vld [vmem:[%s2 + $0x78] sm:$0xff]
    %v54 = vld [vmem:[%s2 + $0x80] sm:$0xff]
    %v55 = vld [vmem:[%s2 + $0x88] sm:$0xff]
    %v56 = vld [vmem:[%s2 + $0x90] sm:$0xff]
    %v57 = vld [vmem:[%s2 + $0x98] sm:$0xff]
    %v58 = vld [vmem:[%s2 + $0xa0] sm:$0xff]
    %v59 = vld [vmem:[%s2 + $0xa8] sm:$0xff]
    %v60 = vld [vmem:[%s2 + $0xb0] sm:$0xff]
    %v61 = vld [vmem:[%s2 + $0xb8] sm:$0xff]
    %v62 = vld [vmem:[%s2 + $0xc0] sm:$0xff]
    %v63 = vld [vmem:[%s2 + $0xc8] sm:$0xff]
    %v64 = vld [vmem:[%s2 + $0xd0] sm:$0xff]
    %v65 = vld [vmem:[%s2 + $0xd8] sm:$0xff]
    %v66 = vld [vmem:[%s2 + $0xe0] sm:$0xff]
    %v67 = vld [vmem:[%s2 + $0xe8] sm:$0xff]
    %v68 = vld [vmem:[%s2 + $0xf0] sm:$0xff]
    %v69 = vld [vmem:[%s2 + $0xf8] sm:$0xff]
    %v70 = vld [vmem:[%s2 + $0x100] sm:$0xff]
    %v71 = vld [vmem:[%s2 + $0x108] sm:$0xff]
    %v72 = vld [vmem:[%s2 + $0x110] sm:$0xff]
    %v73 = vld [vmem:[%s2 + $0x118] sm:$0xff]
    %v74 = vld [vmem:[%s2 + $0x120] sm:$0xff]
    %v75 = vld [vmem:[%s2 + $0x128] sm:$0xff]
    %v76 = vld [vmem:[%s2 + $0x130] sm:$0xff]
    %v77 = vld [vmem:[%s2 + $0x138] sm:$0xff]
    %v78 = vld [vmem:[%s2 + $0x140] sm:$0xff]
    %v79 = vld [vmem:[%s2 + $0x148] sm:$0xff]
    %v80 = vld [vmem:[%s2 + $0x150] sm:$0xff]
    %v81 = vld [vmem:[%s2 + $0x158] sm:$0xff]
    %v82 = vld [vmem:[%s2 + $0x160] sm:$0xff]
    %v83 = vld [vmem:[%s2 + $0x168] sm:$0xff]
    %v84 = vld [vmem:[%s2 + $0x170] sm:$0xff]
    %v85 = vld [vmem:[%s2 + $0x178] sm:$0xff]
    %v134 = vunpack.c.l.b16 %v38
    %v135 = vunpack.c.h.b16 %v38
    %v136 = vunpack.c.l.b16 %v39
    %v137 = vunpack.c.h.b16 %v39
    %v138 = vunpack.c.l.b16 %v40
    %v139 = vunpack.c.h.b16 %v40
    %v140 = vunpack.c.l.b16 %v41
    %v141 = vunpack.c.h.b16 %v41
    %v142 = vunpack.c.l.b16 %v42
    %v143 = vunpack.c.h.b16 %v42
    %v144 = vunpack.c.l.b16 %v43
    %v145 = vunpack.c.h.b16 %v43
    %v146 = vunpack.c.l.b16 %v44
    %v147 = vunpack.c.h.b16 %v44
    %v148 = vunpack.c.l.b16 %v45
    %v149 = vunpack.c.h.b16 %v45
    %v150 = vunpack.c.l.b16 %v46
    %v151 = vunpack.c.h.b16 %v46
    %v152 = vunpack.c.l.b16 %v47
    %v153 = vunpack.c.h.b16 %v47
    %v154 = vunpack.c.l.b16 %v48
    %v155 = vunpack.c.h.b16 %v48
    %v156 = vunpack.c.l.b16 %v49
    %v157 = vunpack.c.h.b16 %v49
    %v158 = vunpack.c.l.b16 %v50
    %v159 = vunpack.c.h.b16 %v50
    %v160 = vunpack.c.l.b16 %v51
    %v161 = vunpack.c.h.b16 %v51
    %v162 = vunpack.c.l.b16 %v52
    %v163 = vunpack.c.h.b16 %v52
    %v164 = vunpack.c.l.b16 %v53
    %v165 = vunpack.c.h.b16 %v53
    %v166 = vunpack.c.l.b16 %v54
    %v167 = vunpack.c.h.b16 %v54
    %v168 = vunpack.c.l.b16 %v55
    %v169 = vunpack.c.h.b16 %v55
    %v170 = vunpack.c.l.b16 %v56
    %v171 = vunpack.c.h.b16 %v56
    %v172 = vunpack.c.l.b16 %v57
    %v173 = vunpack.c.h.b16 %v57
    %v174 = vunpack.c.l.b16 %v58
    %v175 = vunpack.c.h.b16 %v58
    %v176 = vunpack.c.l.b16 %v59
    %v177 = vunpack.c.h.b16 %v59
    %v178 = vunpack.c.l.b16 %v60
    %v179 = vunpack.c.h.b16 %v60
    %v180 = vunpack.c.l.b16 %v61
    %v181 = vunpack.c.h.b16 %v61
    %v182 = vunpack.c.l.b16 %v62
    %v183 = vunpack.c.h.b16 %v62
    %v184 = vunpack.c.l.b16 %v63
    %v185 = vunpack.c.h.b16 %v63
    %v186 = vunpack.c.l.b16 %v64
    %v187 = vunpack.c.h.b16 %v64
    %v188 = vunpack.c.l.b16 %v65
    %v189 = vunpack.c.h.b16 %v65
    %v190 = vunpack.c.l.b16 %v66
    %v191 = vunpack.c.h.b16 %v66
    %v192 = vunpack.c.l.b16 %v67
    %v193 = vunpack.c.h.b16 %v67
    %v194 = vunpack.c.l.b16 %v68
    %v195 = vunpack.c.h.b16 %v68
    %v196 = vunpack.c.l.b16 %v69
    %v197 = vunpack.c.h.b16 %v69
    %v198 = vunpack.c.l.b16 %v70
    %v199 = vunpack.c.h.b16 %v70
    %v200 = vunpack.c.l.b16 %v71
    %v201 = vunpack.c.h.b16 %v71
    %v202 = vunpack.c.l.b16 %v72
    %v203 = vunpack.c.h.b16 %v72
    %v204 = vunpack.c.l.b16 %v73
    %v205 = vunpack.c.h.b16 %v73
    %v206 = vunpack.c.l.b16 %v74
    %v207 = vunpack.c.h.b16 %v74
    %v208 = vunpack.c.l.b16 %v75
    %v209 = vunpack.c.h.b16 %v75
    %v210 = vunpack.c.l.b16 %v76
    %v211 = vunpack.c.h.b16 %v76
    %v212 = vunpack.c.l.b16 %v77
    %v213 = vunpack.c.h.b16 %v77
    %v214 = vunpack.c.l.b16 %v78
    %v215 = vunpack.c.h.b16 %v78
    %v216 = vunpack.c.l.b16 %v79
    %v217 = vunpack.c.h.b16 %v79
    %v218 = vunpack.c.l.b16 %v80
    %v219 = vunpack.c.h.b16 %v80
    %v220 = vunpack.c.l.b16 %v81
    %v221 = vunpack.c.h.b16 %v81
    %v222 = vunpack.c.l.b16 %v82
    %v223 = vunpack.c.h.b16 %v82
    %v224 = vunpack.c.l.b16 %v83
    %v225 = vunpack.c.h.b16 %v83
    %v226 = vunpack.c.l.b16 %v84
    %v227 = vunpack.c.h.b16 %v84
    %v228 = vunpack.c.l.b16 %v85
    %v229 = vunpack.c.h.b16 %v85
    %v230 = vpack.c.b16 %v140, %v134
    %v231 = vpack.c.b16 %v141, %v135
    %v232 = vpack.c.b16 %v142, %v136
    %v233 = vpack.c.b16 %v143, %v137
    %v234 = vpack.c.b16 %v144, %v138
    %v235 = vpack.c.b16 %v145, %v139
    %v236 = vpack.c.b16 %v152, %v146
    %v237 = vpack.c.b16 %v153, %v147
    %v238 = vpack.c.b16 %v154, %v148
    %v239 = vpack.c.b16 %v155, %v149
    %v240 = vpack.c.b16 %v156, %v150
    %v241 = vpack.c.b16 %v157, %v151
    %v242 = vpack.c.b16 %v164, %v158
    %v243 = vpack.c.b16 %v165, %v159
    %v244 = vpack.c.b16 %v166, %v160
    %v245 = vpack.c.b16 %v167, %v161
    %v246 = vpack.c.b16 %v168, %v162
    %v247 = vpack.c.b16 %v169, %v163
    %v248 = vpack.c.b16 %v176, %v170
    %v249 = vpack.c.b16 %v177, %v171
    %v250 = vpack.c.b16 %v178, %v172
    %v251 = vpack.c.b16 %v179, %v173
    %v252 = vpack.c.b16 %v180, %v174
    %v253 = vpack.c.b16 %v181, %v175
    %v254 = vpack.c.b16 %v188, %v182
    %v255 = vpack.c.b16 %v189, %v183
    %v256 = vpack.c.b16 %v190, %v184
    %v257 = vpack.c.b16 %v191, %v185
    %v258 = vpack.c.b16 %v192, %v186
    %v259 = vpack.c.b16 %v193, %v187
    %v260 = vpack.c.b16 %v200, %v194
    %v261 = vpack.c.b16 %v201, %v195
    %v262 = vpack.c.b16 %v202, %v196
    %v263 = vpack.c.b16 %v203, %v197
    %v264 = vpack.c.b16 %v204, %v198
    %v265 = vpack.c.b16 %v205, %v199
    %v266 = vpack.c.b16 %v212, %v206
    %v267 = vpack.c.b16 %v213, %v207
    %v268 = vpack.c.b16 %v214, %v208
    %v269 = vpack.c.b16 %v215, %v209
    %v270 = vpack.c.b16 %v216, %v210
    %v271 = vpack.c.b16 %v217, %v211
    %v272 = vpack.c.b16 %v224, %v218
    %v273 = vpack.c.b16 %v225, %v219
    %v274 = vpack.c.b16 %v226, %v220
    %v275 = vpack.c.b16 %v227, %v221
    %v276 = vpack.c.b16 %v228, %v222
    %v277 = vpack.c.b16 %v229, %v223
    %326 = vmatprep.subr.bf16.mxu0 %v231
    %327 = vmatpush1.bf16.msra.mxu0 %v230
    %328 = vmatprep.subr.bf16.mxu0 %v237
    %329 = vmatpush1.bf16.msra.mxu0 %v236
    %330 = vmatprep.subr.bf16.mxu0 %v243
    %331 = vmatpush1.bf16.msra.mxu0 %v242
    %332 = vmatprep.subr.bf16.mxu0 %v249
    %333 = vmatpush1.bf16.msra.mxu0 %v248
    %334 = vmatprep.subr.bf16.mxu0 %v255
    %335 = vmatpush1.bf16.msra.mxu0 %v254
    %336 = vmatprep.subr.bf16.mxu0 %v261
    %337 = vmatpush1.bf16.msra.mxu0 %v260
    %338 = vmatprep.subr.bf16.mxu0 %v267
    %339 = vmatpush1.bf16.msra.mxu0 %v266
    %340 = vmatprep.subr.bf16.mxu0 %v273
    %341 = vmatpush1.bf16.msra.mxu0 %v272
    %342 = vmatprep.subr.bf16.mxu0 0
    %343 = vmatpush1.bf16.msra.mxu0 0
    %344 = vmatprep.subr.bf16.mxu0 0
    %345 = vmatpush1.bf16.msra.mxu0 0
    %346 = vmatprep.subr.bf16.mxu0 0
    %347 = vmatpush1.bf16.msra.mxu0 0
    %348 = vmatprep.subr.bf16.mxu0 0
    %349 = vmatpush1.bf16.msra.mxu0 0
    %350 = vmatprep.subr.bf16.mxu0 0
    %351 = vmatpush1.bf16.msra.mxu0 0
    %352 = vmatprep.subr.bf16.mxu0 0
    %353 = vmatpush1.bf16.msra.mxu0 0
    %354 = vmatprep.subr.bf16.mxu0 0
    %355 = vmatpush1.bf16.msra.mxu0 0
    %356 = vmatprep.subr.bf16.mxu0 0
    %357 = vmatpush1.bf16.msra.mxu0 0
    %358 = vmatprep.mubr.bf16.mxu0 0
    %359 = vmatmul.mubr.bf16.gmra.mrb[0].mxu0 %v37
    %v360 = vpop.f32.mrb[0].mxu0
    %v361 = vadd.f32 0.0, %v360
    %v362 = vpop.f32.mrb[0].mxu0
    %v363 = vadd.f32 0.0, %v362
    %v364 = vpop.f32.mrb[0].mxu0
    %v365 = vpop.f32.mrb[0].mxu0
    %366 = vdwg.mxu0
    %367 = vmatprep.subr.bf16.mxu0 %v233
    %368 = vmatpush1.bf16.msra.mxu0 %v232
    %369 = vmatprep.subr.bf16.mxu0 %v239
    %370 = vmatpush1.bf16.msra.mxu0 %v238
    %371 = vmatprep.subr.bf16.mxu0 %v245
    %372 = vmatpush1.bf16.msra.mxu0 %v244
    %373 = vmatprep.subr.bf16.mxu0 %v251
    %374 = vmatpush1.bf16.msra.mxu0 %v250
    %375 = vmatprep.subr.bf16.mxu0 %v257
    %376 = vmatpush1.bf16.msra.mxu0 %v256
    %377 = vmatprep.subr.bf16.mxu0 %v263
    %378 = vmatpush1.bf16.msra.mxu0 %v262
    %379 = vmatprep.subr.bf16.mxu0 %v269
    %380 = vmatpush1.bf16.msra.mxu0 %v268
    %381 = vmatprep.subr.bf16.mxu0 %v275
    %382 = vmatpush1.bf16.msra.mxu0 %v274
    %383 = vmatprep.subr.bf16.mxu0 0
    %384 = vmatpush1.bf16.msra.mxu0 0
    %385 = vmatprep.subr.bf16.mxu0 0
    %386 = vmatpush1.bf16.msra.mxu0 0
    %387 = vmatprep.subr.bf16.mxu0 0
    %388 = vmatpush1.bf16.msra.mxu0 0
    %389 = vmatprep.subr.bf16.mxu0 0
    %390 = vmatpush1.bf16.msra.mxu0 0
    %391 = vmatprep.subr.bf16.mxu0 0
    %392 = vmatpush1.bf16.msra.mxu0 0
    %393 = vmatprep.subr.bf16.mxu0 0
    %394 = vmatpush1.bf16.msra.mxu0 0
    %395 = vmatprep.subr.bf16.mxu0 0
    %396 = vmatpush1.bf16.msra.mxu0 0
    %397 = vmatprep.subr.bf16.mxu0 0
    %398 = vmatpush1.bf16.msra.mxu0 0
    %399 = vmatprep.mubr.bf16.mxu0 0
    %400 = vmatmul.mubr.bf16.gmra.mrb[0].mxu0 %v37
    %v401 = vpop.f32.mrb[0].mxu0
    %v402 = vadd.f32 0.0, %v401
    %v403 = vpop.f32.mrb[0].mxu0
    %v404 = vadd.f32 0.0, %v403
    %v405 = vpop.f32.mrb[0].mxu0
    %v406 = vpop.f32.mrb[0].mxu0
    %407 = vdwg.mxu0
    %408 = vmatprep.subr.bf16.mxu0 %v235
    %409 = vmatpush1.bf16.msra.mxu0 %v234
    %410 = vmatprep.subr.bf16.mxu0 %v241
    %411 = vmatpush1.bf16.msra.mxu0 %v240
    %412 = vmatprep.subr.bf16.mxu0 %v247
    %413 = vmatpush1.bf16.msra.mxu0 %v246
    %414 = vmatprep.subr.bf16.mxu0 %v253
    %415 = vmatpush1.bf16.msra.mxu0 %v252
    %416 = vmatprep.subr.bf16.mxu0 %v259
    %417 = vmatpush1.bf16.msra.mxu0 %v258
    %418 = vmatprep.subr.bf16.mxu0 %v265
    %419 = vmatpush1.bf16.msra.mxu0 %v264
    %420 = vmatprep.subr.bf16.mxu0 %v271
    %421 = vmatpush1.bf16.msra.mxu0 %v270
    %422 = vmatprep.subr.bf16.mxu0 %v277
    %423 = vmatpush1.bf16.msra.mxu0 %v276
    %424 = vmatprep.subr.bf16.mxu0 0
    %425 = vmatpush1.bf16.msra.mxu0 0
    %426 = vmatprep.subr.bf16.mxu0 0
    %427 = vmatpush1.bf16.msra.mxu0 0
    %428 = vmatprep.subr.bf16.mxu0 0
    %429 = vmatpush1.bf16.msra.mxu0 0
    %430 = vmatprep.subr.bf16.mxu0 0
    %431 = vmatpush1.bf16.msra.mxu0 0
    %432 = vmatprep.subr.bf16.mxu0 0
    %433 = vmatpush1.bf16.msra.mxu0 0
    %434 = vmatprep.subr.bf16.mxu0 0
    %435 = vmatpush1.bf16.msra.mxu0 0
    %436 = vmatprep.subr.bf16.mxu0 0
    %437 = vmatpush1.bf16.msra.mxu0 0
    %438 = vmatprep.subr.bf16.mxu0 0
    %439 = vmatpush1.bf16.msra.mxu0 0
    %440 = vmatprep.mubr.bf16.mxu0 0
    %441 = vmatmul.mubr.bf16.gmra.mrb[0].mxu0 %v37
    %v442 = vpop.f32.mrb[0].mxu0
    %v443 = vadd.f32 0.0, %v442
    %v444 = vpop.f32.mrb[0].mxu0
    %v445 = vadd.f32 0.0, %v444
    %v446 = vpop.f32.mrb[0].mxu0
    %v447 = vpop.f32.mrb[0].mxu0
    %448 = vdwg.mxu0
    %v449 = vld [vmem:[%s1] sm:$0x3]
    %451 = vset.pattern.permute.xlu0 0
    %452 = vperm.xlu0 %451, %v449
    %v453 = vpop.permute.xlu0 %452
    %v455 = vmul.f32 %v361, %v453
    %v456 = vmul.f32 %v363, %v453
    %v457 = vmul.f32 %v402, %v453
    %v458 = vmul.f32 %v404, %v453
    %v459 = vmul.f32 %v443, %v453
    %v460 = vmul.f32 %v445, %v453
    %v461 = vpack.c.bf16 %v455, %v455
    %v462 = vpack.c.bf16 %v456, %v456
    %v463 = vpack.c.bf16 %v457, %v457
    %v464 = vpack.c.bf16 %v458, %v458
    %v465 = vpack.c.bf16 %v459, %v459
    %v466 = vpack.c.bf16 %v460, %v460
    %v467 = vld [vmem:[%s3] sm:$0xf]
    %v468 = vld [vmem:[%s3 + $0x4] sm:$0xf]
    %v469 = vld [vmem:[%s3 + $0x8] sm:$0xf]
    %v470 = vld [vmem:[%s3 + $0xc] sm:$0xf]
    %v471 = vld [vmem:[%s3 + $0x10] sm:$0xf]
    %v472 = vld [vmem:[%s3 + $0x14] sm:$0xf]
    %v473 = vld [vmem:[%s3 + $0x18] sm:$0xf]
    %v474 = vld [vmem:[%s3 + $0x1c] sm:$0xf]
    %v475 = vld [vmem:[%s3 + $0x20] sm:$0xf]
    %v476 = vld [vmem:[%s3 + $0x24] sm:$0xf]
    %v477 = vld [vmem:[%s3 + $0x28] sm:$0xf]
    %v478 = vld [vmem:[%s3 + $0x2c] sm:$0xf]
    %v479 = vld [vmem:[%s3 + $0x30] sm:$0xf]
    %v480 = vld [vmem:[%s3 + $0x34] sm:$0xf]
    %v481 = vld [vmem:[%s3 + $0x38] sm:$0xf]
    %v482 = vld [vmem:[%s3 + $0x3c] sm:$0xf]
    %v483 = vld [vmem:[%s3 + $0x40] sm:$0xf]
    %v484 = vld [vmem:[%s3 + $0x44] sm:$0xf]
    %v485 = vld [vmem:[%s3 + $0x48] sm:$0xf]
    %v486 = vld [vmem:[%s3 + $0x4c] sm:$0xf]
    %v487 = vld [vmem:[%s3 + $0x50] sm:$0xf]
    %v488 = vld [vmem:[%s3 + $0x54] sm:$0xf]
    %v489 = vld [vmem:[%s3 + $0x58] sm:$0xf]
    %v490 = vld [vmem:[%s3 + $0x5c] sm:$0xf]
    %v491 = vld [vmem:[%s3 + $0x60] sm:$0xf]
    %v492 = vld [vmem:[%s3 + $0x64] sm:$0xf]
    %v493 = vld [vmem:[%s3 + $0x68] sm:$0xf]
    %v494 = vld [vmem:[%s3 + $0x6c] sm:$0xf]
    %v495 = vld [vmem:[%s3 + $0x70] sm:$0xf]
    %v496 = vld [vmem:[%s3 + $0x74] sm:$0xf]
    %v497 = vld [vmem:[%s3 + $0x78] sm:$0xf]
    %v498 = vld [vmem:[%s3 + $0x7c] sm:$0xf]
    %v499 = vld [vmem:[%s3 + $0x80] sm:$0xf]
    %v500 = vld [vmem:[%s3 + $0x84] sm:$0xf]
    %v501 = vld [vmem:[%s3 + $0x88] sm:$0xf]
    %v502 = vld [vmem:[%s3 + $0x8c] sm:$0xf]
    %v503 = vld [vmem:[%s3 + $0x90] sm:$0xf]
    %v504 = vld [vmem:[%s3 + $0x94] sm:$0xf]
    %v505 = vld [vmem:[%s3 + $0x98] sm:$0xf]
    %v506 = vld [vmem:[%s3 + $0x9c] sm:$0xf]
    %v507 = vld [vmem:[%s3 + $0xa0] sm:$0xf]
    %v508 = vld [vmem:[%s3 + $0xa4] sm:$0xf]
    %v509 = vld [vmem:[%s3 + $0xa8] sm:$0xf]
    %v510 = vld [vmem:[%s3 + $0xac] sm:$0xf]
    %v511 = vld [vmem:[%s3 + $0xb0] sm:$0xf]
    %v512 = vld [vmem:[%s3 + $0xb4] sm:$0xf]
    %v513 = vld [vmem:[%s3 + $0xb8] sm:$0xf]
    %v514 = vld [vmem:[%s3 + $0xbc] sm:$0xf]
    %v515 = vld [vmem:[%s3 + $0xc0] sm:$0xf]
    %v516 = vld [vmem:[%s3 + $0xc4] sm:$0xf]
    %v517 = vld [vmem:[%s3 + $0xc8] sm:$0xf]
    %v518 = vld [vmem:[%s3 + $0xcc] sm:$0xf]
    %v519 = vld [vmem:[%s3 + $0xd0] sm:$0xf]
    %v520 = vld [vmem:[%s3 + $0xd4] sm:$0xf]
    %v521 = vld [vmem:[%s3 + $0xd8] sm:$0xf]
    %v522 = vld [vmem:[%s3 + $0xdc] sm:$0xf]
    %v523 = vld [vmem:[%s3 + $0xe0] sm:$0xf]
    %v524 = vld [vmem:[%s3 + $0xe4] sm:$0xf]
    %v525 = vld [vmem:[%s3 + $0xe8] sm:$0xf]
    %v526 = vld [vmem:[%s3 + $0xec] sm:$0xf]
    %v527 = vld [vmem:[%s3 + $0xf0] sm:$0xf]
    %v528 = vld [vmem:[%s3 + $0xf4] sm:$0xf]
    %v529 = vld [vmem:[%s3 + $0xf8] sm:$0xf]
    %v530 = vld [vmem:[%s3 + $0xfc] sm:$0xf]
    %v531 = vld [vmem:[%s3 + $0x100] sm:$0xf]
    %v532 = vld [vmem:[%s3 + $0x104] sm:$0xf]
    %v533 = vld [vmem:[%s3 + $0x108] sm:$0xf]
    %v534 = vld [vmem:[%s3 + $0x10c] sm:$0xf]
    %v535 = vld [vmem:[%s3 + $0x110] sm:$0xf]
    %v536 = vld [vmem:[%s3 + $0x114] sm:$0xf]
    %v537 = vld [vmem:[%s3 + $0x118] sm:$0xf]
    %v538 = vld [vmem:[%s3 + $0x11c] sm:$0xf]
    %v539 = vld [vmem:[%s3 + $0x120] sm:$0xf]
    %v540 = vld [vmem:[%s3 + $0x124] sm:$0xf]
    %v541 = vld [vmem:[%s3 + $0x128] sm:$0xf]
    %v542 = vld [vmem:[%s3 + $0x12c] sm:$0xf]
    %v543 = vld [vmem:[%s3 + $0x130] sm:$0xf]
    %v544 = vld [vmem:[%s3 + $0x134] sm:$0xf]
    %v545 = vld [vmem:[%s3 + $0x138] sm:$0xf]
    %v546 = vld [vmem:[%s3 + $0x13c] sm:$0xf]
    %v547 = vld [vmem:[%s3 + $0x140] sm:$0xf]
    %v548 = vld [vmem:[%s3 + $0x144] sm:$0xf]
    %v549 = vld [vmem:[%s3 + $0x148] sm:$0xf]
    %v550 = vld [vmem:[%s3 + $0x14c] sm:$0xf]
    %v551 = vld [vmem:[%s3 + $0x150] sm:$0xf]
    %v552 = vld [vmem:[%s3 + $0x154] sm:$0xf]
    %v553 = vld [vmem:[%s3 + $0x158] sm:$0xf]
    %v554 = vld [vmem:[%s3 + $0x15c] sm:$0xf]
    %v555 = vld [vmem:[%s3 + $0x160] sm:$0xf]
    %v556 = vld [vmem:[%s3 + $0x164] sm:$0xf]
    %v557 = vld [vmem:[%s3 + $0x168] sm:$0xf]
    %v558 = vld [vmem:[%s3 + $0x16c] sm:$0xf]
    %v559 = vld [vmem:[%s3 + $0x170] sm:$0xf]
    %v560 = vld [vmem:[%s3 + $0x174] sm:$0xf]
    %v561 = vld [vmem:[%s3 + $0x178] sm:$0xf]
    %v562 = vld [vmem:[%s3 + $0x17c] sm:$0xf]
    %v563 = vld [vmem:[%s4] sm:$0x1]
    %v565 = vlaneseq
    %v566 = vshrl.u32 %v565, 7
    %v567 = vsub.s32 0, %v566
    %v568 = vrot.slane %v563, %v567
    %v666 = vunpack.c.l.b16 %v467
    %v667 = vunpack.c.l.b16 %v468
    %v668 = vunpack.c.l.b16 %v469
    %v669 = vunpack.c.l.b16 %v470
    %v670 = vunpack.c.l.b16 %v471
    %v671 = vunpack.c.l.b16 %v472
    %v672 = vunpack.c.l.b16 %v473
    %v673 = vunpack.c.l.b16 %v474
    %v674 = vunpack.c.l.b16 %v475
    %v675 = vunpack.c.l.b16 %v476
    %v676 = vunpack.c.l.b16 %v477
    %v677 = vunpack.c.l.b16 %v478
    %v678 = vunpack.c.l.b16 %v479
    %v679 = vunpack.c.l.b16 %v480
    %v680 = vunpack.c.l.b16 %v481
    %v681 = vunpack.c.l.b16 %v482
    %v682 = vunpack.c.l.b16 %v483
    %v683 = vunpack.c.l.b16 %v484
    %v684 = vunpack.c.l.b16 %v485
    %v685 = vunpack.c.l.b16 %v486
    %v686 = vunpack.c.l.b16 %v487
    %v687 = vunpack.c.l.b16 %v488
    %v688 = vunpack.c.l.b16 %v489
    %v689 = vunpack.c.l.b16 %v490
    %v690 = vunpack.c.l.b16 %v491
    %v691 = vunpack.c.l.b16 %v492
    %v692 = vunpack.c.l.b16 %v493
    %v693 = vunpack.c.l.b16 %v494
    %v694 = vunpack.c.l.b16 %v495
    %v695 = vunpack.c.l.b16 %v496
    %v696 = vunpack.c.l.b16 %v497
    %v697 = vunpack.c.l.b16 %v498
    %v698 = vunpack.c.l.b16 %v499
    %v699 = vunpack.c.l.b16 %v500
    %v700 = vunpack.c.l.b16 %v501
    %v701 = vunpack.c.l.b16 %v502
    %v702 = vunpack.c.l.b16 %v503
    %v703 = vunpack.c.l.b16 %v504
    %v704 = vunpack.c.l.b16 %v505
    %v705 = vunpack.c.l.b16 %v506
    %v706 = vunpack.c.l.b16 %v507
    %v707 = vunpack.c.l.b16 %v508
    %v708 = vunpack.c.l.b16 %v509
    %v709 = vunpack.c.l.b16 %v510
    %v710 = vunpack.c.l.b16 %v511
    %v711 = vunpack.c.l.b16 %v512
    %v712 = vunpack.c.l.b16 %v513
    %v713 = vunpack.c.l.b16 %v514
    %v714 = vunpack.c.l.b16 %v515
    %v715 = vunpack.c.l.b16 %v516
    %v716 = vunpack.c.l.b16 %v517
    %v717 = vunpack.c.l.b16 %v518
    %v718 = vunpack.c.l.b16 %v519
    %v719 = vunpack.c.l.b16 %v520
    %v720 = vunpack.c.l.b16 %v521
    %v721 = vunpack.c.l.b16 %v522
    %v722 = vunpack.c.l.b16 %v523
    %v723 = vunpack.c.l.b16 %v524
    %v724 = vunpack.c.l.b16 %v525
    %v725 = vunpack.c.l.b16 %v526
    %v726 = vunpack.c.l.b16 %v527
    %v727 = vunpack.c.l.b16 %v528
    %v728 = vunpack.c.l.b16 %v529
    %v729 = vunpack.c.l.b16 %v530
    %v730 = vunpack.c.l.b16 %v531
    %v731 = vunpack.c.l.b16 %v532
    %v732 = vunpack.c.l.b16 %v533
    %v733 = vunpack.c.l.b16 %v534
    %v734 = vunpack.c.l.b16 %v535
    %v735 = vunpack.c.l.b16 %v536
    %v736 = vunpack.c.l.b16 %v537
    %v737 = vunpack.c.l.b16 %v538
    %v738 = vunpack.c.l.b16 %v539
    %v739 = vunpack.c.l.b16 %v540
    %v740 = vunpack.c.l.b16 %v541
    %v741 = vunpack.c.l.b16 %v542
    %v742 = vunpack.c.l.b16 %v543
    %v743 = vunpack.c.l.b16 %v544
    %v744 = vunpack.c.l.b16 %v545
    %v745 = vunpack.c.l.b16 %v546
    %v746 = vunpack.c.l.b16 %v547
    %v747 = vunpack.c.l.b16 %v548
    %v748 = vunpack.c.l.b16 %v549
    %v749 = vunpack.c.l.b16 %v550
    %v750 = vunpack.c.l.b16 %v551
    %v751 = vunpack.c.l.b16 %v552
    %v752 = vunpack.c.l.b16 %v553
    %v753 = vunpack.c.l.b16 %v554
    %v754 = vunpack.c.l.b16 %v555
    %v755 = vunpack.c.l.b16 %v556
    %v756 = vunpack.c.l.b16 %v557
    %v757 = vunpack.c.l.b16 %v558
    %v758 = vunpack.c.l.b16 %v559
    %v759 = vunpack.c.l.b16 %v560
    %v760 = vunpack.c.l.b16 %v561
    %v761 = vunpack.c.l.b16 %v562
    %v762 = vpack.c.b16 %v667, %v666
    %v763 = vpack.c.b16 %v669, %v668
    %v764 = vpack.c.b16 %v671, %v670
    %v765 = vpack.c.b16 %v673, %v672
    %v766 = vpack.c.b16 %v675, %v674
    %v767 = vpack.c.b16 %v677, %v676
    %v768 = vpack.c.b16 %v679, %v678
    %v769 = vpack.c.b16 %v681, %v680
    %v770 = vpack.c.b16 %v683, %v682
    %v771 = vpack.c.b16 %v685, %v684
    %v772 = vpack.c.b16 %v687, %v686
    %v773 = vpack.c.b16 %v689, %v688
    %v774 = vpack.c.b16 %v691, %v690
    %v775 = vpack.c.b16 %v693, %v692
    %v776 = vpack.c.b16 %v695, %v694
    %v777 = vpack.c.b16 %v697, %v696
    %v778 = vpack.c.b16 %v699, %v698
    %v779 = vpack.c.b16 %v701, %v700
    %v780 = vpack.c.b16 %v703, %v702
    %v781 = vpack.c.b16 %v705, %v704
    %v782 = vpack.c.b16 %v707, %v706
    %v783 = vpack.c.b16 %v709, %v708
    %v784 = vpack.c.b16 %v711, %v710
    %v785 = vpack.c.b16 %v713, %v712
    %v786 = vpack.c.b16 %v715, %v714
    %v787 = vpack.c.b16 %v717, %v716
    %v788 = vpack.c.b16 %v719, %v718
    %v789 = vpack.c.b16 %v721, %v720
    %v790 = vpack.c.b16 %v723, %v722
    %v791 = vpack.c.b16 %v725, %v724
    %v792 = vpack.c.b16 %v727, %v726
    %v793 = vpack.c.b16 %v729, %v728
    %v794 = vpack.c.b16 %v731, %v730
    %v795 = vpack.c.b16 %v733, %v732
    %v796 = vpack.c.b16 %v735, %v734
    %v797 = vpack.c.b16 %v737, %v736
    %v798 = vpack.c.b16 %v739, %v738
    %v799 = vpack.c.b16 %v741, %v740
    %v800 = vpack.c.b16 %v743, %v742
    %v801 = vpack.c.b16 %v745, %v744
    %v802 = vpack.c.b16 %v747, %v746
    %v803 = vpack.c.b16 %v749, %v748
    %v804 = vpack.c.b16 %v751, %v750
    %v805 = vpack.c.b16 %v753, %v752
    %v806 = vpack.c.b16 %v755, %v754
    %v807 = vpack.c.b16 %v757, %v756
    %v808 = vpack.c.b16 %v759, %v758
    %v809 = vpack.c.b16 %v761, %v760
    %858 = vmatprep.subr.bf16.mxu0 0
    %859 = vmatpush1.bf16.msra.mxu0 %v762
    %860 = vmatprep.subr.bf16.mxu0 0
    %861 = vmatpush1.bf16.msra.mxu0 %v763
    %862 = vmatprep.subr.bf16.mxu0 0
    %863 = vmatpush1.bf16.msra.mxu0 %v764
    %864 = vmatprep.subr.bf16.mxu0 0
    %865 = vmatpush1.bf16.msra.mxu0 %v765
    %866 = vmatprep.subr.bf16.mxu0 0
    %867 = vmatpush1.bf16.msra.mxu0 %v766
    %868 = vmatprep.subr.bf16.mxu0 0
    %869 = vmatpush1.bf16.msra.mxu0 %v767
    %870 = vmatprep.subr.bf16.mxu0 0
    %871 = vmatpush1.bf16.msra.mxu0 %v768
    %872 = vmatprep.subr.bf16.mxu0 0
    %873 = vmatpush1.bf16.msra.mxu0 %v769
    %874 = vmatprep.subr.bf16.mxu0 0
    %875 = vmatpush1.bf16.msra.mxu0 %v770
    %876 = vmatprep.subr.bf16.mxu0 0
    %877 = vmatpush1.bf16.msra.mxu0 %v771
    %878 = vmatprep.subr.bf16.mxu0 0
    %879 = vmatpush1.bf16.msra.mxu0 %v772
    %880 = vmatprep.subr.bf16.mxu0 0
    %881 = vmatpush1.bf16.msra.mxu0 %v773
    %882 = vmatprep.subr.bf16.mxu0 0
    %883 = vmatpush1.bf16.msra.mxu0 %v774
    %884 = vmatprep.subr.bf16.mxu0 0
    %885 = vmatpush1.bf16.msra.mxu0 %v775
    %886 = vmatprep.subr.bf16.mxu0 0
    %887 = vmatpush1.bf16.msra.mxu0 %v776
    %888 = vmatprep.subr.bf16.mxu0 0
    %889 = vmatpush1.bf16.msra.mxu0 %v777
    %890 = vmatprep.mubr.bf16.mxu0 %v462
    %891 = vmatmul.mubr.bf16.gmra.mrb[0].mxu0 %v461
    %v892 = vpop.f32.mrb[0].mxu0
    %v893 = vadd.f32 %v568, %v892
    %v894 = vpop.f32.mrb[0].mxu0
    %v895 = vpop.f32.mrb[0].mxu0
    %v896 = vpop.f32.mrb[0].mxu0
    %897 = vdwg.mxu0
    %898 = vmatprep.subr.bf16.mxu0 0
    %899 = vmatpush1.bf16.msra.mxu0 %v778
    %900 = vmatprep.subr.bf16.mxu0 0
    %901 = vmatpush1.bf16.msra.mxu0 %v779
    %902 = vmatprep.subr.bf16.mxu0 0
    %903 = vmatpush1.bf16.msra.mxu0 %v780
    %904 = vmatprep.subr.bf16.mxu0 0
    %905 = vmatpush1.bf16.msra.mxu0 %v781
    %906 = vmatprep.subr.bf16.mxu0 0
    %907 = vmatpush1.bf16.msra.mxu0 %v782
    %908 = vmatprep.subr.bf16.mxu0 0
    %909 = vmatpush1.bf16.msra.mxu0 %v783
    %910 = vmatprep.subr.bf16.mxu0 0
    %911 = vmatpush1.bf16.msra.mxu0 %v784
    %912 = vmatprep.subr.bf16.mxu0 0
    %913 = vmatpush1.bf16.msra.mxu0 %v785
    %914 = vmatprep.subr.bf16.mxu0 0
    %915 = vmatpush1.bf16.msra.mxu0 %v786
    %916 = vmatprep.subr.bf16.mxu0 0
    %917 = vmatpush1.bf16.msra.mxu0 %v787
    %918 = vmatprep.subr.bf16.mxu0 0
    %919 = vmatpush1.bf16.msra.mxu0 %v788
    %920 = vmatprep.subr.bf16.mxu0 0
    %921 = vmatpush1.bf16.msra.mxu0 %v789
    %922 = vmatprep.subr.bf16.mxu0 0
    %923 = vmatpush1.bf16.msra.mxu0 %v790
    %924 = vmatprep.subr.bf16.mxu0 0
    %925 = vmatpush1.bf16.msra.mxu0 %v791
    %926 = vmatprep.subr.bf16.mxu0 0
    %927 = vmatpush1.bf16.msra.mxu0 %v792
    %928 = vmatprep.subr.bf16.mxu0 0
    %929 = vmatpush1.bf16.msra.mxu0 %v793
    %930 = vmatprep.mubr.bf16.mxu0 %v464
    %931 = vmatmul.mubr.bf16.gmra.mrb[0].mxu0 %v463
    %v932 = vpop.f32.mrb[0].mxu0
    %v933 = vadd.f32 %v893, %v932
    %v934 = vpop.f32.mrb[0].mxu0
    %v935 = vpop.f32.mrb[0].mxu0
    %v936 = vpop.f32.mrb[0].mxu0
    %937 = vdwg.mxu0
    %938 = vmatprep.subr.bf16.mxu0 0
    %939 = vmatpush1.bf16.msra.mxu0 %v794
    %940 = vmatprep.subr.bf16.mxu0 0
    %941 = vmatpush1.bf16.msra.mxu0 %v795
    %942 = vmatprep.subr.bf16.mxu0 0
    %943 = vmatpush1.bf16.msra.mxu0 %v796
    %944 = vmatprep.subr.bf16.mxu0 0
    %945 = vmatpush1.bf16.msra.mxu0 %v797
    %946 = vmatprep.subr.bf16.mxu0 0
    %947 = vmatpush1.bf16.msra.mxu0 %v798
    %948 = vmatprep.subr.bf16.mxu0 0
    %949 = vmatpush1.bf16.msra.mxu0 %v799
    %950 = vmatprep.subr.bf16.mxu0 0
    %951 = vmatpush1.bf16.msra.mxu0 %v800
    %952 = vmatprep.subr.bf16.mxu0 0
    %953 = vmatpush1.bf16.msra.mxu0 %v801
    %954 = vmatprep.subr.bf16.mxu0 0
    %955 = vmatpush1.bf16.msra.mxu0 %v802
    %956 = vmatprep.subr.bf16.mxu0 0
    %957 = vmatpush1.bf16.msra.mxu0 %v803
    %958 = vmatprep.subr.bf16.mxu0 0
    %959 = vmatpush1.bf16.msra.mxu0 %v804
    %960 = vmatprep.subr.bf16.mxu0 0
    %961 = vmatpush1.bf16.msra.mxu0 %v805
    %962 = vmatprep.subr.bf16.mxu0 0
    %963 = vmatpush1.bf16.msra.mxu0 %v806
    %964 = vmatprep.subr.bf16.mxu0 0
    %965 = vmatpush1.bf16.msra.mxu0 %v807
    %966 = vmatprep.subr.bf16.mxu0 0
    %967 = vmatpush1.bf16.msra.mxu0 %v808
    %968 = vmatprep.subr.bf16.mxu0 0
    %969 = vmatpush1.bf16.msra.mxu0 %v809
    %970 = vmatprep.mubr.bf16.mxu0 %v466
    %971 = vmatmul.mubr.bf16.gmra.mrb[0].mxu0 %v465
    %v972 = vpop.f32.mrb[0].mxu0
    %v973 = vadd.f32 %v933, %v972
    %v974 = vpop.f32.mrb[0].mxu0
    %v975 = vpop.f32.mrb[0].mxu0
    %v976 = vpop.f32.mrb[0].mxu0
    %977 = vdwg.mxu0
    %v978 = vmax.f32 %v973, 0.0
    %v979 = vpack.c.bf16 %v978, %v978
    %v980 = vld [vmem:[%s5] sm:$0xf]
    %v981 = vld [vmem:[%s5 + $0x4] sm:$0xf]
    %v982 = vld [vmem:[%s5 + $0x8] sm:$0xf]
    %v983 = vld [vmem:[%s5 + $0xc] sm:$0xf]
    %v984 = vld [vmem:[%s5 + $0x10] sm:$0xf]
    %v985 = vld [vmem:[%s5 + $0x14] sm:$0xf]
    %v986 = vld [vmem:[%s5 + $0x18] sm:$0xf]
    %v987 = vld [vmem:[%s5 + $0x1c] sm:$0xf]
    %v988 = vld [vmem:[%s5 + $0x20] sm:$0xf]
    %v989 = vld [vmem:[%s5 + $0x24] sm:$0xf]
    %v990 = vld [vmem:[%s5 + $0x28] sm:$0xf]
    %v991 = vld [vmem:[%s5 + $0x2c] sm:$0xf]
    %v992 = vld [vmem:[%s5 + $0x30] sm:$0xf]
    %v993 = vld [vmem:[%s5 + $0x34] sm:$0xf]
    %v994 = vld [vmem:[%s5 + $0x38] sm:$0xf]
    %v995 = vld [vmem:[%s5 + $0x3c] sm:$0xf]
    %v996 = vld [vmem:[%s6] sm:$0x1]
    %v998 = vlaneseq
    %v999 = vshrl.u32 %v998, 7
    %v1000 = vsub.s32 0, %v999
    %v1001 = vrot.slane %v996, %v1000
    %v1019 = vunpack.c.l.b16 %v980
    %v1020 = vunpack.c.l.b16 %v981
    %v1021 = vunpack.c.l.b16 %v982
    %v1022 = vunpack.c.l.b16 %v983
    %v1023 = vunpack.c.l.b16 %v984
    %v1024 = vunpack.c.l.b16 %v985
    %v1025 = vunpack.c.l.b16 %v986
    %v1026 = vunpack.c.l.b16 %v987
    %v1027 = vunpack.c.l.b16 %v988
    %v1028 = vunpack.c.l.b16 %v989
    %v1029 = vunpack.c.l.b16 %v990
    %v1030 = vunpack.c.l.b16 %v991
    %v1031 = vunpack.c.l.b16 %v992
    %v1032 = vunpack.c.l.b16 %v993
    %v1033 = vunpack.c.l.b16 %v994
    %v1034 = vunpack.c.l.b16 %v995
    %v1035 = vpack.c.b16 %v1020, %v1019
    %v1036 = vpack.c.b16 %v1022, %v1021
    %v1037 = vpack.c.b16 %v1024, %v1023
    %v1038 = vpack.c.b16 %v1026, %v1025
    %v1039 = vpack.c.b16 %v1028, %v1027
    %v1040 = vpack.c.b16 %v1030, %v1029
    %v1041 = vpack.c.b16 %v1032, %v1031
    %v1042 = vpack.c.b16 %v1034, %v1033
    %1051 = vmatprep.subr.bf16.mxu0 0
    %1052 = vmatpush1.bf16.msra.mxu0 %v1035
    %1053 = vmatprep.subr.bf16.mxu0 0
    %1054 = vmatpush1.bf16.msra.mxu0 %v1036
    %1055 = vmatprep.subr.bf16.mxu0 0
    %1056 = vmatpush1.bf16.msra.mxu0 %v1037
    %1057 = vmatprep.subr.bf16.mxu0 0
    %1058 = vmatpush1.bf16.msra.mxu0 %v1038
    %1059 = vmatprep.subr.bf16.mxu0 0
    %1060 = vmatpush1.bf16.msra.mxu0 %v1039
    %1061 = vmatprep.subr.bf16.mxu0 0
    %1062 = vmatpush1.bf16.msra.mxu0 %v1040
    %1063 = vmatprep.subr.bf16.mxu0 0
    %1064 = vmatpush1.bf16.msra.mxu0 %v1041
    %1065 = vmatprep.subr.bf16.mxu0 0
    %1066 = vmatpush1.bf16.msra.mxu0 %v1042
    %1067 = vmatprep.subr.bf16.mxu0 0
    %1068 = vmatpush1.bf16.msra.mxu0 0
    %1069 = vmatprep.subr.bf16.mxu0 0
    %1070 = vmatpush1.bf16.msra.mxu0 0
    %1071 = vmatprep.subr.bf16.mxu0 0
    %1072 = vmatpush1.bf16.msra.mxu0 0
    %1073 = vmatprep.subr.bf16.mxu0 0
    %1074 = vmatpush1.bf16.msra.mxu0 0
    %1075 = vmatprep.subr.bf16.mxu0 0
    %1076 = vmatpush1.bf16.msra.mxu0 0
    %1077 = vmatprep.subr.bf16.mxu0 0
    %1078 = vmatpush1.bf16.msra.mxu0 0
    %1079 = vmatprep.subr.bf16.mxu0 0
    %1080 = vmatpush1.bf16.msra.mxu0 0
    %1081 = vmatprep.subr.bf16.mxu0 0
    %1082 = vmatpush1.bf16.msra.mxu0 0
    %1083 = vmatprep.mubr.bf16.mxu0 0
    %1084 = vmatmul.mubr.bf16.gmra.mrb[0].mxu0 %v979
    %v1085 = vpop.f32.mrb[0].mxu0
    %v1086 = vadd.f32 %v1001, %v1085
    %v1087 = vpop.f32.mrb[0].mxu0
    %v1088 = vpop.f32.mrb[0].mxu0
    %v1089 = vpop.f32.mrb[0].mxu0
    %1090 = vdwg.mxu0
    %1091 = vst [vmem:[#allocation2] sm:$0x3] %v1086
    // Predicated region
    $region30: #{a_call__.1} parent=1 // pred_check
      _
    $region31: #{a_call__.1} parent=1 // pred_check_branch
      %1093 = sbr.rel (0) target = $region33
    $region32: #{a_call__.1} parent=1 // pred_region
      %s1095 = ssub.s32 32, 32
      %1096 = vsyncadd [#allocation3], %s1095
      %s1098 = sshll.u32 [#allocation2], 4
      %s1099 = int_to_ptr.vmem [resolvable:$true] %s1098
      %1101 = dma.vmem_to_hbm [thread:$0]  %s1099, 32, %s7, [#allocation3]
    $region33: #{a_call__.1} parent=1 // pred_fallthru
      _
    // Predicated region
    $region34: #{a_call__.1} parent=1 // pred_check
      _
    $region35: #{a_call__.1} parent=1 // pred_check_branch
      %1103 = sbr.rel (0) target = $region37
    $region36: #{a_call__.1} parent=1 // pred_region
      %1104 = dma.done [#allocation3], 32
    $region37: #{a_call__.1} parent=1 // pred_fallthru
      _
    %1105 = vsyncpa [#allocation3], 1

</llo_original>
